<compile_context>
chip_gen: v5e
topology: v5e:2x2
jax: 0.10.0
libtpu: 0.0.40
codegen_flags: <defaults>
</compile_context>

<pallas_src>
import math

import jax
import jax.numpy as jnp
from jax import lax
from jax.experimental import pallas as pl
from jax.experimental.pallas import tpu as pltpu


# ---------------------------------------------------------------------------
# One-time parameter / mask preparation (NOT per-forward-call work).
# ---------------------------------------------------------------------------
def prepare_self_attention_params(params, scale, mxu_dtype=jnp.bfloat16):
    """Fuse QKV weights, fold the softmax scale into Wq/bq, cast MXU operands.

    params = (wq_t, bq, wk_t, bk, wv_t, bv, wo_t, bo) with weights already
    pre-transposed to [in, out] (y = x @ W_t + b, matching nn.Linear).
    """
    wq_t, bq, wk_t, bk, wv_t, bv, wo_t, bo = params
    # Fold the 1/sqrt(head_dim) scale into the Q projection (one-time weight
    # transform — (xWq + bq) * s == x(Wq*s) + bq*s).
    wq_s = wq_t * jnp.float32(scale)
    bq_s = bq * jnp.float32(scale)
    wqkv = jnp.concatenate([wq_s, wk_t, wv_t], axis=1).astype(mxu_dtype)  # (C, 3C)
    bqkv = jnp.concatenate([bq_s, bk, bv], axis=1).astype(jnp.float32)   # (1, 3C)
    wo_c = wo_t.astype(mxu_dtype)                                        # (C, C)
    bo_c = bo.astype(jnp.float32)                                        # (1, C)
    return wqkv, bqkv, wo_c, bo_c


def prepare_attention_bias(mask):
    """int/bool mask [Bm, 1, T, T] (nonzero = keep) -> additive f32 bias [Bm, T, T].

    Built once per mask (e.g. once for a causal mask), not per forward call.
    Uses -1e30 (not finfo.min) so the stable softmax never overflows; note a
    fully-masked row yields a softmax of the raw scores rather than the exact
    uniform row the reference produces (unreachable with a causal mask).
    """
    m = mask[:, 0]  # (Bm, T, T)
    return jnp.where(m == 0, jnp.float32(-1e30), jnp.float32(0.0))


# ---------------------------------------------------------------------------
# Kernel
# ---------------------------------------------------------------------------
def _self_attention_kernel(batch_per_tile, num_heads, head_dim, bias_batched,
                           mxu_dtype):
    H, D = num_heads, head_dim
    exact = (mxu_dtype == jnp.float32)

    def kernel(x_ref, bias_ref, wqkv_ref, bqkv_ref, wo_ref, bo_ref,
               o_ref, ctx_ref):
        Bt, T, C = x_ref.shape
        cast = lambda a: a.astype(mxu_dtype)

        # ---- fused QKV projection for the whole (flattened) batch tile -----
        # (Bt*T, C) @ (C, 3C): one MXU pass, lane-dense 3C-wide result.
        x = x_ref[...].reshape(Bt * T, C)
        qkv = lax.dot_general(cast(x), wqkv_ref[...],
                              (((1,), (0,)), ((), ())),
                              preferred_element_type=jnp.float32)
        qkv = qkv + bqkv_ref[...]                                  # (Bt*T, 3C) f32

        # ---- per-(batch, head) attention; ctx written into VMEM scratch ----
        for b in range(Bt):
            r0 = b * T
            bias_b = bias_ref[b] if bias_batched else bias_ref[0]  # (T, T) f32
            for h in range(H):
                lo = h * D
                qh = cast(qkv[r0:r0 + T, lo:lo + D])               # (T, D)
                kh = cast(qkv[r0:r0 + T, C + lo:C + lo + D])       # (T, D)
                vh = cast(qkv[r0:r0 + T, 2 * C + lo:2 * C + lo + D])

                # scores (T, T) = qh @ kh^T ; scale already folded into Wq.
                s = lax.dot_general(qh, kh, (((1,), (1,)), ((), ())),
                                    preferred_element_type=jnp.float32)
                s = s + bias_b

                # numerically-stable softmax in f32
                m = jnp.max(s, axis=-1, keepdims=True)
                e = jnp.exp(s - m)
                denom = jnp.sum(e, axis=-1, keepdims=True)
                # approx (EUP) reciprocal only on the bf16 path; exact on f32.
                p = e * pl.reciprocal(denom, approx=not exact)

                # static-offset store of this head's (T, D) context slice
                ctx_ref[r0:r0 + T, lo:lo + D] = lax.dot_general(
                    cast(p), vh, (((1,), (0,)), ((), ())),
                    preferred_element_type=jnp.float32)

        # ---- output projection for the whole batch tile, single store ------
        out = lax.dot_general(cast(ctx_ref[...]), wo_ref[...],
                              (((1,), (0,)), ((), ())),
                              preferred_element_type=jnp.float32)
        out = out + bo_ref[...]
        # TODO(synk): at realistic C (multiple of 128) this store is lane-dense;
        # at C=32 it is a masked vst — restructuring to a 128-lane slab would
        # cost an in-kernel relayout at these shapes, so it is left as-is.
        o_ref[...] = out.reshape(Bt, T, C).astype(o_ref.dtype)

    return kernel


# ---------------------------------------------------------------------------
# Wrapper
# ---------------------------------------------------------------------------
def self_attention(x, attn_bias, fused_params, num_heads, head_dim,
                   *, mxu_dtype=jnp.bfloat16, batch_tiles=1):
    """x: [B, T, C] f32; attn_bias: [Bm, T, T] additive f32 bias (Bm in {1, B});
    fused_params from prepare_self_attention_params (must match mxu_dtype).

    batch_tiles=1 collapses the grid to one step (best at small shapes on the
    single-TC v5e/v6e); use batch_tiles>=2 on v7x at realistic shapes so both
    TensorCores get 'parallel' work.
    """
    B, T, C = x.shape
    assert B % batch_tiles == 0
    Bt = B // batch_tiles
    wqkv, bqkv, wo_c, bo_c = fused_params
    bias_batched = attn_bias.shape[0] > 1
    if bias_batched:
        assert attn_bias.shape[0] == B
        bias_spec = pl.BlockSpec((Bt, T, T), lambda i: (i, 0, 0))
    else:
        bias_spec = pl.BlockSpec((1, T, T), lambda i: (0, 0, 0))  # resident

    kernel = _self_attention_kernel(Bt, num_heads, head_dim, bias_batched,
                                    mxu_dtype)

    return pl.pallas_call(
        kernel,
        out_shape=jax.ShapeDtypeStruct((B, T, C), x.dtype),
        grid_spec=pltpu.PrefetchScalarGridSpec(
            num_scalar_prefetch=0,
            grid=(batch_tiles,),
            in_specs=[
                pl.BlockSpec((Bt, T, C), lambda i: (i, 0, 0)),   # x
                bias_spec,                                       # additive bias
                pl.BlockSpec((C, 3 * C), lambda i: (0, 0)),      # fused Wqkv
                pl.BlockSpec((1, 3 * C), lambda i: (0, 0)),      # fused bias
                pl.BlockSpec((C, C), lambda i: (0, 0)),          # Wo
                pl.BlockSpec((1, C), lambda i: (0, 0)),          # bo
            ],
            out_specs=pl.BlockSpec((Bt, T, C), lambda i: (i, 0, 0)),
            scratch_shapes=[pltpu.VMEM((Bt * T, C), jnp.float32)],  # ctx slab
        ),
        compiler_params=pltpu.CompilerParams(
            dimension_semantics=("parallel",)),
    )(x, attn_bias, wqkv, bqkv, wo_c, bo_c)


# ---------------------------------------------------------------------------
# Pure-JAX reference matching the PyTorch forward exactly (f32).
# ---------------------------------------------------------------------------
def reference_self_attention(x, mask, params, num_heads, head_dim, scale):
    B, T, C = x.shape
    wq_t, bq, wk_t, bk, wv_t, bv, wo_t, bo = params
    q = x @ wq_t + bq
    k = x @ wk_t + bk
    v = x @ wv_t + bv
    qh, kh, vh = [t.reshape(B, T, num_heads, head_dim).transpose(0, 2, 1, 3)
                  for t in (q, k, v)]
    attn = jnp.einsum('bhtd,bhsd->bhts', qh, kh) * scale
    attn = jnp.where(mask == 0, jnp.finfo(jnp.float32).min, attn)
    attn = jax.nn.softmax(attn, axis=-1)
    ctx = jnp.einsum('bhts,bhsd->bhtd', attn, vh)
    merged = ctx.transpose(0, 2, 1, 3).reshape(B, T, C)
    return merged @ wo_t + bo


if __name__ == "__main__":
    # Config (small, consistent with the module):
    B, T = 2, 8
    num_heads, head_dim = 4, 8
    C = num_heads * head_dim          # embed_dim = 32
    scale = 1.0 / math.sqrt(head_dim)

    key = jax.random.PRNGKey(0)
    keys = jax.random.split(key, 10)

    x = jax.random.normal(keys[0], (B, T, C), dtype=jnp.float32)

    # Causal mask, shared across batch: keep it [1, 1, T, T] (broadcasts in the
    # reference; becomes a single resident (T, T) bias block in the kernel).
    causal = jnp.tril(jnp.ones((T, T), dtype=jnp.int32))
    mask = causal[None, None, :, :]

    def init_linear(kw, kb):
        # nn.Linear weight is (out, in); store pre-transposed (in, out).
        w = 0.02 * jax.random.normal(kw, (C, C), dtype=jnp.float32)
        b = 0.02 * jax.random.normal(kb, (1, C), dtype=jnp.float32)
        return w.T, b

    wq_t, bq = init_linear(keys[1], keys[2])
    wk_t, bk = init_linear(keys[3], keys[4])
    wv_t, bv = init_linear(keys[5], keys[6])
    wo_t, bo = init_linear(keys[7], keys[8])
    params = (wq_t, bq, wk_t, bk, wv_t, bv, wo_t, bo)

    ref = reference_self_attention(x, mask, params, num_heads, head_dim, scale)

    # One-time prep (outside the forward path).
    attn_bias = prepare_attention_bias(mask)                       # (1, T, T)
    fused_bf16 = prepare_self_attention_params(params, scale, jnp.bfloat16)
    fused_f32 = prepare_self_attention_params(params, scale, jnp.float32)

    # Default bf16 MXU path, collapsed grid (one step).
    out = self_attention(x, attn_bias, fused_bf16, num_heads, head_dim)
    out = jax.block_until_ready(out)
    assert out.shape == (B, T, C)
    assert jnp.allclose(out, ref, atol=2e-2, rtol=2e-2), \
        f"bf16 max abs err {jnp.max(jnp.abs(out - ref))}"

    # bf16 path with a parallel batch axis (v7x two-TC configuration).
    out_p = self_attention(x, attn_bias, fused_bf16, num_heads, head_dim,
                           batch_tiles=2)
    out_p = jax.block_until_ready(out_p)
    assert jnp.allclose(out_p, ref, atol=2e-2, rtol=2e-2), \
        f"bf16/batch_tiles=2 max abs err {jnp.max(jnp.abs(out_p - ref))}"

    # f32 debug path: exact module semantics (exact reciprocal, f32 MXU).
    out_f32 = self_attention(x, attn_bias, fused_f32, num_heads, head_dim,
                             mxu_dtype=jnp.float32)
    out_f32 = jax.block_until_ready(out_f32)
    assert jnp.allclose(out_f32, ref, atol=1e-3, rtol=1e-3), \
        f"f32 max abs err {jnp.max(jnp.abs(out_f32 - ref))}"

    print("KERNEL_OK")
</pallas_src>

<mosaic_0001>
module attributes {stable_mosaic.version = 11 : i64} {
  func.func @kernel(%arg0: i32, %arg1: memref<2x8x32xf32, #tpu.memory_space<vmem>>, %arg2: memref<1x8x8xf32, #tpu.memory_space<vmem>>, %arg3: memref<32x96xbf16, #tpu.memory_space<vmem>>, %arg4: memref<1x96xf32, #tpu.memory_space<vmem>>, %arg5: memref<32x32xbf16, #tpu.memory_space<vmem>>, %arg6: memref<1x32xf32, #tpu.memory_space<vmem>>, %arg7: memref<2x8x32xf32, #tpu.memory_space<vmem>>, %arg8: memref<16x32xf32, #tpu.memory_space<vmem>>) attributes {dimension_semantics = [#tpu.dimension_semantics<parallel>], iteration_bounds = array<i64: 1>, scalar_prefetch = 0 : i64, scratch_operands = 1 : i64, tpu.core_type = #tpu.core_type<tc>, window_params = [{transform_indices = @transform_0, window_bounds = array<i64: 2, 8, 32>}, {pipeline_mode = #tpu.pipeline_mode<synchronous>, transform_indices = @transform_1, window_bounds = array<i64: 1, 8, 8>}, {pipeline_mode = #tpu.pipeline_mode<synchronous>, transform_indices = @transform_2, window_bounds = array<i64: 32, 96>}, {pipeline_mode = #tpu.pipeline_mode<synchronous>, transform_indices = @transform_3, window_bounds = array<i64: 1, 96>}, {pipeline_mode = #tpu.pipeline_mode<synchronous>, transform_indices = @transform_4, window_bounds = array<i64: 32, 32>}, {pipeline_mode = #tpu.pipeline_mode<synchronous>, transform_indices = @transform_5, window_bounds = array<i64: 1, 32>}, {transform_indices = @transform_6, window_bounds = array<i64: 2, 8, 32>}]} {
    %c0 = arith.constant 0 : index
    %c0_0 = arith.constant 0 : index
    %c0_1 = arith.constant 0 : index
    %0 = vector.load %arg1[%c0, %c0_0, %c0_1] : memref<2x8x32xf32, #tpu.memory_space<vmem>>, vector<2x8x32xf32>
    %1 = vector.shape_cast %0 : vector<2x8x32xf32> to vector<16x32xf32>
    %2 = arith.truncf %1 : vector<16x32xf32> to vector<16x32xbf16>
    %c0_2 = arith.constant 0 : index
    %c0_3 = arith.constant 0 : index
    %3 = vector.load %arg3[%c0_2, %c0_3] : memref<32x96xbf16, #tpu.memory_space<vmem>>, vector<32x96xbf16>
    %cst = arith.constant dense<0.000000e+00> : vector<16x96xf32>
    %4 = tpu.matmul %2, %3, %cst {dimension_numbers = #tpu.dot_dimension_numbers<[1], [0], [0], [1], [0, 0, 1, 1], [], []>} : vector<16x32xbf16>, vector<32x96xbf16>, vector<16x96xf32> -> vector<16x96xf32>
    %c0_4 = arith.constant 0 : index
    %c0_5 = arith.constant 0 : index
    %5 = vector.load %arg4[%c0_4, %c0_5] : memref<1x96xf32, #tpu.memory_space<vmem>>, vector<1x96xf32>
    %6 = vector.broadcast %5 : vector<1x96xf32> to vector<16x96xf32>
    %7 = arith.addf %4, %6 : vector<16x96xf32>
    %c0_6 = arith.constant 0 : index
    %c0_7 = arith.constant 0 : index
    %c0_8 = arith.constant 0 : index
    %8 = vector.load %arg2[%c0_6, %c0_7, %c0_8] : memref<1x8x8xf32, #tpu.memory_space<vmem>>, vector<1x8x8xf32>
    %9 = vector.shape_cast %8 : vector<1x8x8xf32> to vector<8x8xf32>
    %10 = vector.extract_strided_slice %7 {offsets = [0, 0], sizes = [8, 8], strides = [1, 1]} : vector<16x96xf32> to vector<8x8xf32>
    %11 = arith.truncf %10 : vector<8x8xf32> to vector<8x8xbf16>
    %12 = vector.extract_strided_slice %7 {offsets = [0, 32], sizes = [8, 8], strides = [1, 1]} : vector<16x96xf32> to vector<8x8xf32>
    %13 = arith.truncf %12 : vector<8x8xf32> to vector<8x8xbf16>
    %14 = vector.extract_strided_slice %7 {offsets = [0, 64], sizes = [8, 8], strides = [1, 1]} : vector<16x96xf32> to vector<8x8xf32>
    %15 = arith.truncf %14 : vector<8x8xf32> to vector<8x8xbf16>
    %cst_9 = arith.constant dense<0.000000e+00> : vector<8x8xf32>
    %16 = tpu.matmul %11, %13, %cst_9 {dimension_numbers = #tpu.dot_dimension_numbers<[1], [1], [0], [0], [0, 0, 1, 0], [], []>} : vector<8x8xbf16>, vector<8x8xbf16>, vector<8x8xf32> -> vector<8x8xf32>
    %17 = arith.addf %16, %9 : vector<8x8xf32>
    %cst_10 = arith.constant dense<0xFF800000> : vector<8xf32>
    %18 = vector.multi_reduction <maximumf>, %17, %cst_10 [1] : vector<8x8xf32> to vector<8xf32>
    %19 = vector.shape_cast %18 : vector<8xf32> to vector<8x1xf32>
    %20 = vector.broadcast %19 : vector<8x1xf32> to vector<8x8xf32>
    %21 = arith.subf %17, %20 : vector<8x8xf32>
    %22 = math.exp %21 : vector<8x8xf32>
    %cst_11 = arith.constant dense<0.000000e+00> : vector<8xf32>
    %23 = vector.multi_reduction <add>, %22, %cst_11 [1] : vector<8x8xf32> to vector<8xf32>
    %24 = vector.shape_cast %23 : vector<8xf32> to vector<8x1xf32>
    %25 = tpu.reciprocal %24 {approx = true} : vector<8x1xf32> -> vector<8x1xf32>
    %26 = vector.broadcast %25 : vector<8x1xf32> to vector<8x8xf32>
    %27 = arith.mulf %22, %26 : vector<8x8xf32>
    %28 = arith.truncf %27 : vector<8x8xf32> to vector<8x8xbf16>
    %cst_12 = arith.constant dense<0.000000e+00> : vector<8x8xf32>
    %29 = tpu.matmul %28, %15, %cst_12 {dimension_numbers = #tpu.dot_dimension_numbers<[1], [0], [0], [1], [0, 0, 1, 1], [], []>} : vector<8x8xbf16>, vector<8x8xbf16>, vector<8x8xf32> -> vector<8x8xf32>
    %c0_13 = arith.constant 0 : index
    %c0_14 = arith.constant 0 : index
    %30 = vector.load %arg8[%c0_13, %c0_14] : memref<16x32xf32, #tpu.memory_space<vmem>>, vector<8x8xf32>
    tpu.vector_store %arg8[%c0_13, %c0_14], %29 {strides = array<i32>} : memref<16x32xf32, #tpu.memory_space<vmem>>, vector<8x8xf32>,
    %31 = vector.extract_strided_slice %7 {offsets = [0, 8], sizes = [8, 8], strides = [1, 1]} : vector<16x96xf32> to vector<8x8xf32>
    %32 = arith.truncf %31 : vector<8x8xf32> to vector<8x8xbf16>
    %33 = vector.extract_strided_slice %7 {offsets = [0, 40], sizes = [8, 8], strides = [1, 1]} : vector<16x96xf32> to vector<8x8xf32>
    %34 = arith.truncf %33 : vector<8x8xf32> to vector<8x8xbf16>
    %35 = vector.extract_strided_slice %7 {offsets = [0, 72], sizes = [8, 8], strides = [1, 1]} : vector<16x96xf32> to vector<8x8xf32>
    %36 = arith.truncf %35 : vector<8x8xf32> to vector<8x8xbf16>
    %cst_15 = arith.constant dense<0.000000e+00> : vector<8x8xf32>
    %37 = tpu.matmul %32, %34, %cst_15 {dimension_numbers = #tpu.dot_dimension_numbers<[1], [1], [0], [0], [0, 0, 1, 0], [], []>} : vector<8x8xbf16>, vector<8x8xbf16>, vector<8x8xf32> -> vector<8x8xf32>
    %38 = arith.addf %37, %9 : vector<8x8xf32>
    %cst_16 = arith.constant dense<0xFF800000> : vector<8xf32>
    %39 = vector.multi_reduction <maximumf>, %38, %cst_16 [1] : vector<8x8xf32> to vector<8xf32>
    %40 = vector.shape_cast %39 : vector<8xf32> to vector<8x1xf32>
    %41 = vector.broadcast %40 : vector<8x1xf32> to vector<8x8xf32>
    %42 = arith.subf %38, %41 : vector<8x8xf32>
    %43 = math.exp %42 : vector<8x8xf32>
    %cst_17 = arith.constant dense<0.000000e+00> : vector<8xf32>
    %44 = vector.multi_reduction <add>, %43, %cst_17 [1] : vector<8x8xf32> to vector<8xf32>
    %45 = vector.shape_cast %44 : vector<8xf32> to vector<8x1xf32>
    %46 = tpu.reciprocal %45 {approx = true} : vector<8x1xf32> -> vector<8x1xf32>
    %47 = vector.broadcast %46 : vector<8x1xf32> to vector<8x8xf32>
    %48 = arith.mulf %43, %47 : vector<8x8xf32>
    %49 = arith.truncf %48 : vector<8x8xf32> to vector<8x8xbf16>
    %cst_18 = arith.constant dense<0.000000e+00> : vector<8x8xf32>
    %50 = tpu.matmul %49, %36, %cst_18 {dimension_numbers = #tpu.dot_dimension_numbers<[1], [0], [0], [1], [0, 0, 1, 1], [], []>} : vector<8x8xbf16>, vector<8x8xbf16>, vector<8x8xf32> -> vector<8x8xf32>
    %c0_19 = arith.constant 0 : index
    %c8 = arith.constant 8 : index
    %51 = vector.load %arg8[%c0_19, %c8] : memref<16x32xf32, #tpu.memory_space<vmem>>, vector<8x8xf32>
    tpu.vector_store %arg8[%c0_19, %c8], %50 {strides = array<i32>} : memref<16x32xf32, #tpu.memory_space<vmem>>, vector<8x8xf32>,
    %52 = vector.extract_strided_slice %7 {offsets = [0, 16], sizes = [8, 8], strides = [1, 1]} : vector<16x96xf32> to vector<8x8xf32>
    %53 = arith.truncf %52 : vector<8x8xf32> to vector<8x8xbf16>
    %54 = vector.extract_strided_slice %7 {offsets = [0, 48], sizes = [8, 8], strides = [1, 1]} : vector<16x96xf32> to vector<8x8xf32>
    %55 = arith.truncf %54 : vector<8x8xf32> to vector<8x8xbf16>
    %56 = vector.extract_strided_slice %7 {offsets = [0, 80], sizes = [8, 8], strides = [1, 1]} : vector<16x96xf32> to vector<8x8xf32>
    %57 = arith.truncf %56 : vector<8x8xf32> to vector<8x8xbf16>
    %cst_20 = arith.constant dense<0.000000e+00> : vector<8x8xf32>
    %58 = tpu.matmul %53, %55, %cst_20 {dimension_numbers = #tpu.dot_dimension_numbers<[1], [1], [0], [0], [0, 0, 1, 0], [], []>} : vector<8x8xbf16>, vector<8x8xbf16>, vector<8x8xf32> -> vector<8x8xf32>
    %59 = arith.addf %58, %9 : vector<8x8xf32>
    %cst_21 = arith.constant dense<0xFF800000> : vector<8xf32>
    %60 = vector.multi_reduction <maximumf>, %59, %cst_21 [1] : vector<8x8xf32> to vector<8xf32>
    %61 = vector.shape_cast %60 : vector<8xf32> to vector<8x1xf32>
    %62 = vector.broadcast %61 : vector<8x1xf32> to vector<8x8xf32>
    %63 = arith.subf %59, %62 : vector<8x8xf32>
    %64 = math.exp %63 : vector<8x8xf32>
    %cst_22 = arith.constant dense<0.000000e+00> : vector<8xf32>
    %65 = vector.multi_reduction <add>, %64, %cst_22 [1] : vector<8x8xf32> to vector<8xf32>
    %66 = vector.shape_cast %65 : vector<8xf32> to vector<8x1xf32>
    %67 = tpu.reciprocal %66 {approx = true} : vector<8x1xf32> -> vector<8x1xf32>
    %68 = vector.broadcast %67 : vector<8x1xf32> to vector<8x8xf32>
    %69 = arith.mulf %64, %68 : vector<8x8xf32>
    %70 = arith.truncf %69 : vector<8x8xf32> to vector<8x8xbf16>
    %cst_23 = arith.constant dense<0.000000e+00> : vector<8x8xf32>
    %71 = tpu.matmul %70, %57, %cst_23 {dimension_numbers = #tpu.dot_dimension_numbers<[1], [0], [0], [1], [0, 0, 1, 1], [], []>} : vector<8x8xbf16>, vector<8x8xbf16>, vector<8x8xf32> -> vector<8x8xf32>
    %c0_24 = arith.constant 0 : index
    %c16 = arith.constant 16 : index
    %72 = vector.load %arg8[%c0_24, %c16] : memref<16x32xf32, #tpu.memory_space<vmem>>, vector<8x8xf32>
    tpu.vector_store %arg8[%c0_24, %c16], %71 {strides = array<i32>} : memref<16x32xf32, #tpu.memory_space<vmem>>, vector<8x8xf32>,
    %73 = vector.extract_strided_slice %7 {offsets = [0, 24], sizes = [8, 8], strides = [1, 1]} : vector<16x96xf32> to vector<8x8xf32>
    %74 = arith.truncf %73 : vector<8x8xf32> to vector<8x8xbf16>
    %75 = vector.extract_strided_slice %7 {offsets = [0, 56], sizes = [8, 8], strides = [1, 1]} : vector<16x96xf32> to vector<8x8xf32>
    %76 = arith.truncf %75 : vector<8x8xf32> to vector<8x8xbf16>
    %77 = vector.extract_strided_slice %7 {offsets = [0, 88], sizes = [8, 8], strides = [1, 1]} : vector<16x96xf32> to vector<8x8xf32>
    %78 = arith.truncf %77 : vector<8x8xf32> to vector<8x8xbf16>
    %cst_25 = arith.constant dense<0.000000e+00> : vector<8x8xf32>
    %79 = tpu.matmul %74, %76, %cst_25 {dimension_numbers = #tpu.dot_dimension_numbers<[1], [1], [0], [0], [0, 0, 1, 0], [], []>} : vector<8x8xbf16>, vector<8x8xbf16>, vector<8x8xf32> -> vector<8x8xf32>
    %80 = arith.addf %79, %9 : vector<8x8xf32>
    %cst_26 = arith.constant dense<0xFF800000> : vector<8xf32>
    %81 = vector.multi_reduction <maximumf>, %80, %cst_26 [1] : vector<8x8xf32> to vector<8xf32>
    %82 = vector.shape_cast %81 : vector<8xf32> to vector<8x1xf32>
    %83 = vector.broadcast %82 : vector<8x1xf32> to vector<8x8xf32>
    %84 = arith.subf %80, %83 : vector<8x8xf32>
    %85 = math.exp %84 : vector<8x8xf32>
    %cst_27 = arith.constant dense<0.000000e+00> : vector<8xf32>
    %86 = vector.multi_reduction <add>, %85, %cst_27 [1] : vector<8x8xf32> to vector<8xf32>
    %87 = vector.shape_cast %86 : vector<8xf32> to vector<8x1xf32>
    %88 = tpu.reciprocal %87 {approx = true} : vector<8x1xf32> -> vector<8x1xf32>
    %89 = vector.broadcast %88 : vector<8x1xf32> to vector<8x8xf32>
    %90 = arith.mulf %85, %89 : vector<8x8xf32>
    %91 = arith.truncf %90 : vector<8x8xf32> to vector<8x8xbf16>
    %cst_28 = arith.constant dense<0.000000e+00> : vector<8x8xf32>
    %92 = tpu.matmul %91, %78, %cst_28 {dimension_numbers = #tpu.dot_dimension_numbers<[1], [0], [0], [1], [0, 0, 1, 1], [], []>} : vector<8x8xbf16>, vector<8x8xbf16>, vector<8x8xf32> -> vector<8x8xf32>
    %c0_29 = arith.constant 0 : index
    %c24 = arith.constant 24 : index
    %93 = vector.load %arg8[%c0_29, %c24] : memref<16x32xf32, #tpu.memory_space<vmem>>, vector<8x8xf32>
    tpu.vector_store %arg8[%c0_29, %c24], %92 {strides = array<i32>} : memref<16x32xf32, #tpu.memory_space<vmem>>, vector<8x8xf32>,
    %c0_30 = arith.constant 0 : index
    %c0_31 = arith.constant 0 : index
    %c0_32 = arith.constant 0 : index
    %94 = vector.load %arg2[%c0_30, %c0_31, %c0_32] : memref<1x8x8xf32, #tpu.memory_space<vmem>>, vector<1x8x8xf32>
    %95 = vector.shape_cast %94 : vector<1x8x8xf32> to vector<8x8xf32>
    %96 = vector.extract_strided_slice %7 {offsets = [8, 0], sizes = [8, 8], strides = [1, 1]} : vector<16x96xf32> to vector<8x8xf32>
    %97 = arith.truncf %96 : vector<8x8xf32> to vector<8x8xbf16>
    %98 = vector.extract_strided_slice %7 {offsets = [8, 32], sizes = [8, 8], strides = [1, 1]} : vector<16x96xf32> to vector<8x8xf32>
    %99 = arith.truncf %98 : vector<8x8xf32> to vector<8x8xbf16>
    %100 = vector.extract_strided_slice %7 {offsets = [8, 64], sizes = [8, 8], strides = [1, 1]} : vector<16x96xf32> to vector<8x8xf32>
    %101 = arith.truncf %100 : vector<8x8xf32> to vector<8x8xbf16>
    %cst_33 = arith.constant dense<0.000000e+00> : vector<8x8xf32>
    %102 = tpu.matmul %97, %99, %cst_33 {dimension_numbers = #tpu.dot_dimension_numbers<[1], [1], [0], [0], [0, 0, 1, 0], [], []>} : vector<8x8xbf16>, vector<8x8xbf16>, vector<8x8xf32> -> vector<8x8xf32>
    %103 = arith.addf %102, %95 : vector<8x8xf32>
    %cst_34 = arith.constant dense<0xFF800000> : vector<8xf32>
    %104 = vector.multi_reduction <maximumf>, %103, %cst_34 [1] : vector<8x8xf32> to vector<8xf32>
    %105 = vector.shape_cast %104 : vector<8xf32> to vector<8x1xf32>
    %106 = vector.broadcast %105 : vector<8x1xf32> to vector<8x8xf32>
    %107 = arith.subf %103, %106 : vector<8x8xf32>
    %108 = math.exp %107 : vector<8x8xf32>
    %cst_35 = arith.constant dense<0.000000e+00> : vector<8xf32>
    %109 = vector.multi_reduction <add>, %108, %cst_35 [1] : vector<8x8xf32> to vector<8xf32>
    %110 = vector.shape_cast %109 : vector<8xf32> to vector<8x1xf32>
    %111 = tpu.reciprocal %110 {approx = true} : vector<8x1xf32> -> vector<8x1xf32>
    %112 = vector.broadcast %111 : vector<8x1xf32> to vector<8x8xf32>
    %113 = arith.mulf %108, %112 : vector<8x8xf32>
    %114 = arith.truncf %113 : vector<8x8xf32> to vector<8x8xbf16>
    %cst_36 = arith.constant dense<0.000000e+00> : vector<8x8xf32>
    %115 = tpu.matmul %114, %101, %cst_36 {dimension_numbers = #tpu.dot_dimension_numbers<[1], [0], [0], [1], [0, 0, 1, 1], [], []>} : vector<8x8xbf16>, vector<8x8xbf16>, vector<8x8xf32> -> vector<8x8xf32>
    %c8_37 = arith.constant 8 : index
    %c0_38 = arith.constant 0 : index
    %116 = vector.load %arg8[%c8_37, %c0_38] : memref<16x32xf32, #tpu.memory_space<vmem>>, vector<8x8xf32>
    tpu.vector_store %arg8[%c8_37, %c0_38], %115 {strides = array<i32>} : memref<16x32xf32, #tpu.memory_space<vmem>>, vector<8x8xf32>,
    %117 = vector.extract_strided_slice %7 {offsets = [8, 8], sizes = [8, 8], strides = [1, 1]} : vector<16x96xf32> to vector<8x8xf32>
    %118 = arith.truncf %117 : vector<8x8xf32> to vector<8x8xbf16>
    %119 = vector.extract_strided_slice %7 {offsets = [8, 40], sizes = [8, 8], strides = [1, 1]} : vector<16x96xf32> to vector<8x8xf32>
    %120 = arith.truncf %119 : vector<8x8xf32> to vector<8x8xbf16>
    %121 = vector.extract_strided_slice %7 {offsets = [8, 72], sizes = [8, 8], strides = [1, 1]} : vector<16x96xf32> to vector<8x8xf32>
    %122 = arith.truncf %121 : vector<8x8xf32> to vector<8x8xbf16>
    %cst_39 = arith.constant dense<0.000000e+00> : vector<8x8xf32>
    %123 = tpu.matmul %118, %120, %cst_39 {dimension_numbers = #tpu.dot_dimension_numbers<[1], [1], [0], [0], [0, 0, 1, 0], [], []>} : vector<8x8xbf16>, vector<8x8xbf16>, vector<8x8xf32> -> vector<8x8xf32>
    %124 = arith.addf %123, %95 : vector<8x8xf32>
    %cst_40 = arith.constant dense<0xFF800000> : vector<8xf32>
    %125 = vector.multi_reduction <maximumf>, %124, %cst_40 [1] : vector<8x8xf32> to vector<8xf32>
    %126 = vector.shape_cast %125 : vector<8xf32> to vector<8x1xf32>
    %127 = vector.broadcast %126 : vector<8x1xf32> to vector<8x8xf32>
    %128 = arith.subf %124, %127 : vector<8x8xf32>
    %129 = math.exp %128 : vector<8x8xf32>
    %cst_41 = arith.constant dense<0.000000e+00> : vector<8xf32>
    %130 = vector.multi_reduction <add>, %129, %cst_41 [1] : vector<8x8xf32> to vector<8xf32>
    %131 = vector.shape_cast %130 : vector<8xf32> to vector<8x1xf32>
    %132 = tpu.reciprocal %131 {approx = true} : vector<8x1xf32> -> vector<8x1xf32>
    %133 = vector.broadcast %132 : vector<8x1xf32> to vector<8x8xf32>
    %134 = arith.mulf %129, %133 : vector<8x8xf32>
    %135 = arith.truncf %134 : vector<8x8xf32> to vector<8x8xbf16>
    %cst_42 = arith.constant dense<0.000000e+00> : vector<8x8xf32>
    %136 = tpu.matmul %135, %122, %cst_42 {dimension_numbers = #tpu.dot_dimension_numbers<[1], [0], [0], [1], [0, 0, 1, 1], [], []>} : vector<8x8xbf16>, vector<8x8xbf16>, vector<8x8xf32> -> vector<8x8xf32>
    %c8_43 = arith.constant 8 : index
    %c8_44 = arith.constant 8 : index
    %137 = vector.load %arg8[%c8_43, %c8_44] : memref<16x32xf32, #tpu.memory_space<vmem>>, vector<8x8xf32>
    tpu.vector_store %arg8[%c8_43, %c8_44], %136 {strides = array<i32>} : memref<16x32xf32, #tpu.memory_space<vmem>>, vector<8x8xf32>,
    %138 = vector.extract_strided_slice %7 {offsets = [8, 16], sizes = [8, 8], strides = [1, 1]} : vector<16x96xf32> to vector<8x8xf32>
    %139 = arith.truncf %138 : vector<8x8xf32> to vector<8x8xbf16>
    %140 = vector.extract_strided_slice %7 {offsets = [8, 48], sizes = [8, 8], strides = [1, 1]} : vector<16x96xf32> to vector<8x8xf32>
    %141 = arith.truncf %140 : vector<8x8xf32> to vector<8x8xbf16>
    %142 = vector.extract_strided_slice %7 {offsets = [8, 80], sizes = [8, 8], strides = [1, 1]} : vector<16x96xf32> to vector<8x8xf32>
    %143 = arith.truncf %142 : vector<8x8xf32> to vector<8x8xbf16>
    %cst_45 = arith.constant dense<0.000000e+00> : vector<8x8xf32>
    %144 = tpu.matmul %139, %141, %cst_45 {dimension_numbers = #tpu.dot_dimension_numbers<[1], [1], [0], [0], [0, 0, 1, 0], [], []>} : vector<8x8xbf16>, vector<8x8xbf16>, vector<8x8xf32> -> vector<8x8xf32>
    %145 = arith.addf %144, %95 : vector<8x8xf32>
    %cst_46 = arith.constant dense<0xFF800000> : vector<8xf32>
    %146 = vector.multi_reduction <maximumf>, %145, %cst_46 [1] : vector<8x8xf32> to vector<8xf32>
    %147 = vector.shape_cast %146 : vector<8xf32> to vector<8x1xf32>
    %148 = vector.broadcast %147 : vector<8x1xf32> to vector<8x8xf32>
    %149 = arith.subf %145, %148 : vector<8x8xf32>
    %150 = math.exp %149 : vector<8x8xf32>
    %cst_47 = arith.constant dense<0.000000e+00> : vector<8xf32>
    %151 = vector.multi_reduction <add>, %150, %cst_47 [1] : vector<8x8xf32> to vector<8xf32>
    %152 = vector.shape_cast %151 : vector<8xf32> to vector<8x1xf32>
    %153 = tpu.reciprocal %152 {approx = true} : vector<8x1xf32> -> vector<8x1xf32>
    %154 = vector.broadcast %153 : vector<8x1xf32> to vector<8x8xf32>
    %155 = arith.mulf %150, %154 : vector<8x8xf32>
    %156 = arith.truncf %155 : vector<8x8xf32> to vector<8x8xbf16>
    %cst_48 = arith.constant dense<0.000000e+00> : vector<8x8xf32>
    %157 = tpu.matmul %156, %143, %cst_48 {dimension_numbers = #tpu.dot_dimension_numbers<[1], [0], [0], [1], [0, 0, 1, 1], [], []>} : vector<8x8xbf16>, vector<8x8xbf16>, vector<8x8xf32> -> vector<8x8xf32>
    %c8_49 = arith.constant 8 : index
    %c16_50 = arith.constant 16 : index
    %158 = vector.load %arg8[%c8_49, %c16_50] : memref<16x32xf32, #tpu.memory_space<vmem>>, vector<8x8xf32>
    tpu.vector_store %arg8[%c8_49, %c16_50], %157 {strides = array<i32>} : memref<16x32xf32, #tpu.memory_space<vmem>>, vector<8x8xf32>,
    %159 = vector.extract_strided_slice %7 {offsets = [8, 24], sizes = [8, 8], strides = [1, 1]} : vector<16x96xf32> to vector<8x8xf32>
    %160 = arith.truncf %159 : vector<8x8xf32> to vector<8x8xbf16>
    %161 = vector.extract_strided_slice %7 {offsets = [8, 56], sizes = [8, 8], strides = [1, 1]} : vector<16x96xf32> to vector<8x8xf32>
    %162 = arith.truncf %161 : vector<8x8xf32> to vector<8x8xbf16>
    %163 = vector.extract_strided_slice %7 {offsets = [8, 88], sizes = [8, 8], strides = [1, 1]} : vector<16x96xf32> to vector<8x8xf32>
    %164 = arith.truncf %163 : vector<8x8xf32> to vector<8x8xbf16>
    %cst_51 = arith.constant dense<0.000000e+00> : vector<8x8xf32>
    %165 = tpu.matmul %160, %162, %cst_51 {dimension_numbers = #tpu.dot_dimension_numbers<[1], [1], [0], [0], [0, 0, 1, 0], [], []>} : vector<8x8xbf16>, vector<8x8xbf16>, vector<8x8xf32> -> vector<8x8xf32>
    %166 = arith.addf %165, %95 : vector<8x8xf32>
    %cst_52 = arith.constant dense<0xFF800000> : vector<8xf32>
    %167 = vector.multi_reduction <maximumf>, %166, %cst_52 [1] : vector<8x8xf32> to vector<8xf32>
    %168 = vector.shape_cast %167 : vector<8xf32> to vector<8x1xf32>
    %169 = vector.broadcast %168 : vector<8x1xf32> to vector<8x8xf32>
    %170 = arith.subf %166, %169 : vector<8x8xf32>
    %171 = math.exp %170 : vector<8x8xf32>
    %cst_53 = arith.constant dense<0.000000e+00> : vector<8xf32>
    %172 = vector.multi_reduction <add>, %171, %cst_53 [1] : vector<8x8xf32> to vector<8xf32>
    %173 = vector.shape_cast %172 : vector<8xf32> to vector<8x1xf32>
    %174 = tpu.reciprocal %173 {approx = true} : vector<8x1xf32> -> vector<8x1xf32>
    %175 = vector.broadcast %174 : vector<8x1xf32> to vector<8x8xf32>
    %176 = arith.mulf %171, %175 : vector<8x8xf32>
    %177 = arith.truncf %176 : vector<8x8xf32> to vector<8x8xbf16>
    %cst_54 = arith.constant dense<0.000000e+00> : vector<8x8xf32>
    %178 = tpu.matmul %177, %164, %cst_54 {dimension_numbers = #tpu.dot_dimension_numbers<[1], [0], [0], [1], [0, 0, 1, 1], [], []>} : vector<8x8xbf16>, vector<8x8xbf16>, vector<8x8xf32> -> vector<8x8xf32>
    %c8_55 = arith.constant 8 : index
    %c24_56 = arith.constant 24 : index
    %179 = vector.load %arg8[%c8_55, %c24_56] : memref<16x32xf32, #tpu.memory_space<vmem>>, vector<8x8xf32>
    tpu.vector_store %arg8[%c8_55, %c24_56], %178 {strides = array<i32>} : memref<16x32xf32, #tpu.memory_space<vmem>>, vector<8x8xf32>,
    %c0_57 = arith.constant 0 : index
    %c0_58 = arith.constant 0 : index
    %180 = vector.load %arg8[%c0_57, %c0_58] : memref<16x32xf32, #tpu.memory_space<vmem>>, vector<16x32xf32>
    %181 = arith.truncf %180 : vector<16x32xf32> to vector<16x32xbf16>
    %c0_59 = arith.constant 0 : index
    %c0_60 = arith.constant 0 : index
    %182 = vector.load %arg5[%c0_59, %c0_60] : memref<32x32xbf16, #tpu.memory_space<vmem>>, vector<32x32xbf16>
    %cst_61 = arith.constant dense<0.000000e+00> : vector<16x32xf32>
    %183 = tpu.matmul %181, %182, %cst_61 {dimension_numbers = #tpu.dot_dimension_numbers<[1], [0], [0], [1], [0, 0, 1, 1], [], []>} : vector<16x32xbf16>, vector<32x32xbf16>, vector<16x32xf32> -> vector<16x32xf32>
    %c0_62 = arith.constant 0 : index
    %c0_63 = arith.constant 0 : index
    %184 = vector.load %arg6[%c0_62, %c0_63] : memref<1x32xf32, #tpu.memory_space<vmem>>, vector<1x32xf32>
    %185 = vector.broadcast %184 : vector<1x32xf32> to vector<16x32xf32>
    %186 = arith.addf %183, %185 : vector<16x32xf32>
    %187 = vector.shape_cast %186 : vector<16x32xf32> to vector<2x8x32xf32>
    %c0_64 = arith.constant 0 : index
    %c0_65 = arith.constant 0 : index
    %c0_66 = arith.constant 0 : index
    %188 = vector.load %arg7[%c0_64, %c0_65, %c0_66] : memref<2x8x32xf32, #tpu.memory_space<vmem>>, vector<2x8x32xf32>
    tpu.vector_store %arg7[%c0_64, %c0_65, %c0_66], %187 {strides = array<i32>} : memref<2x8x32xf32, #tpu.memory_space<vmem>>, vector<2x8x32xf32>,
    return
  }
  func.func @transform_0(%arg0: i32) -> (i32, i32, i32) {
    %c0_i32 = arith.constant 0 : i32
    %c0_i32_0 = arith.constant 0 : i32
    %c0_i32_1 = arith.constant 0 : i32
    return %arg0, %c0_i32, %c0_i32_0 : i32, i32, i32
  }
  func.func @transform_1(%arg0: i32) -> (i32, i32, i32) {
    %c0_i32 = arith.constant 0 : i32
    %c0_i32_0 = arith.constant 0 : i32
    %c0_i32_1 = arith.constant 0 : i32
    %c0_i32_2 = arith.constant 0 : i32
    return %c0_i32, %c0_i32_0, %c0_i32_1 : i32, i32, i32
  }
  func.func @transform_2(%arg0: i32) -> (i32, i32) {
    %c0_i32 = arith.constant 0 : i32
    %c0_i32_0 = arith.constant 0 : i32
    %c0_i32_1 = arith.constant 0 : i32
    return %c0_i32, %c0_i32_0 : i32, i32
  }
  func.func @transform_3(%arg0: i32) -> (i32, i32) {
    %c0_i32 = arith.constant 0 : i32
    %c0_i32_0 = arith.constant 0 : i32
    %c0_i32_1 = arith.constant 0 : i32
    return %c0_i32, %c0_i32_0 : i32, i32
  }
  func.func @transform_4(%arg0: i32) -> (i32, i32) {
    %c0_i32 = arith.constant 0 : i32
    %c0_i32_0 = arith.constant 0 : i32
    %c0_i32_1 = arith.constant 0 : i32
    return %c0_i32, %c0_i32_0 : i32, i32
  }
  func.func @transform_5(%arg0: i32) -> (i32, i32) {
    %c0_i32 = arith.constant 0 : i32
    %c0_i32_0 = arith.constant 0 : i32
    %c0_i32_1 = arith.constant 0 : i32
    return %c0_i32, %c0_i32_0 : i32, i32
  }
  func.func @transform_6(%arg0: i32) -> (i32, i32, i32) {
    %c0_i32 = arith.constant 0 : i32
    %c0_i32_0 = arith.constant 0 : i32
    %c0_i32_1 = arith.constant 0 : i32
    return %arg0, %c0_i32, %c0_i32_0 : i32, i32, i32
  }
}

</mosaic_0001>

<llo_original>
// kernel: tpu_custom_call.1
$region0: #{tpu_custom_call.1}
  #allocation0 [shape = 'u32[]', space=smem, size = 0x4, offset = 0x4, fixed_abs, tag = 'smem constant byte address 0x4 - core index']
  #allocation1 [shape = 'u32[72,128]{1,0:T(1,128)}', space=vmem, size = 0x9000, scoped, tag = 'internal scratch']
  #allocation2 [shape = 'f32[16,32]{1,0:T(8,128)}', space=vmem, size = 0x2000, scoped, tag = 'scratch operand']
  %s0 = inlined_call_operand.hbm [shape: f32[2,8,32], index: 0, kind: input, shape index: {}]
  %s1 = inlined_call_operand.hbm [shape: f32[1,8,8], index: 1, kind: input, shape index: {}]
  %s2 = inlined_call_operand.hbm [shape: bf16[32,96], index: 2, kind: input, shape index: {}]
  %s3 = inlined_call_operand.vmem [shape: f32[1,96], index: 3, kind: input, shape index: {}]
  %s4 = inlined_call_operand.hbm [shape: bf16[32,32], index: 4, kind: input, shape index: {}]
  %s5 = inlined_call_operand.vmem [shape: f32[1,32], index: 5, kind: input, shape index: {}]
  %s6 = inlined_call_operand.hbm [shape: f32[2,8,32], index: 6, kind: output, shape index: {}]
  %s7 = sld [smem:[#allocation0]]
  $region50: #{tpu_custom_call.1} parent=0
    _
  %s9 = ssub.s32 1, %s7
  %s10 = scalar_select 0, %s9, %s7
  $region1: #{tpu_custom_call.1} parent=0
    #allocation3 [shape = 'u8[8192]{0}', space=vmem, size = 0x2000, scoped, tag = 'input window, operand 0, single buffered']
    #allocation4 [shape = 's32[1]{0}', space=sflag, size = 0x4, scoped, tag = 'scoped memory for tpu_custom_call.1']
    #allocation5 [shape = 's32[1]{0}', space=sflag, size = 0x4, scoped, tag = 'scoped memory for tpu_custom_call.1']
    #allocation6 [shape = 'u8[4096]{0}', space=vmem, size = 0x1000, scoped, tag = 'input window, operand 1, single buffered']
    #allocation7 [shape = 's32[1]{0}', space=sflag, size = 0x4, scoped, tag = 'scoped memory for tpu_custom_call.1']
    #allocation8 [shape = 'u8[8192]{0}', space=vmem, size = 0x2000, scoped, tag = 'input window, operand 2, single buffered']
    #allocation9 [shape = 'u8[8192]{0}', space=vmem, size = 0x2000, scoped, tag = 'input window, operand 4, single buffered']
    #allocation10 [shape = 's32[1]{0}', space=sflag, size = 0x4, scoped, tag = 'scoped memory for tpu_custom_call.1']
    #allocation11 [shape = 'u8[8192]{0}', space=vmem, size = 0x2000, scoped, tag = 'output window, operand 0, single buffered']
    %11 = vsyncpa [#allocation4], 0
    %12 = vsyncpa [#allocation7], 0
    %13 = vsyncpa [#allocation10], 0
    %14 = vsyncpa [#allocation5], 0
    // Predicated region
    $region2: #{tpu_custom_call.1} parent=1 // pred_check
      _
    $region3: #{tpu_custom_call.1} parent=1 // pred_check_branch
      %16 = sbr.rel (0) target = $region5
    $region4: #{tpu_custom_call.1} parent=1 // pred_region
      %18 = vsyncadd [#allocation4], 0
      %s19 = sshll.u32 %s0, 4
      %s20 = int_to_ptr.hbm [resolvable:$true] %s19
      %s21 = sshll.u32 [#allocation3], 4
      %s22 = int_to_ptr.vmem [resolvable:$true] %s21
      %27 = dma.hbm_to_vmem [thread:$0]  %s20, 256, %s22, [#allocation4], 128, 128, 8
    $region5: #{tpu_custom_call.1} parent=1 // pred_fallthru
      _
    // Predicated region
    $region6: #{tpu_custom_call.1} parent=1 // pred_check
      _
    $region7: #{tpu_custom_call.1} parent=1 // pred_check_branch
      %29 = sbr.rel (0) target = $region9
    $region8: #{tpu_custom_call.1} parent=1 // pred_region
      %31 = vsyncadd [#allocation7], 0
      %s33 = sshll.u32 %s1, 4
      %s34 = int_to_ptr.hbm [resolvable:$true] %s33
      %s35 = sshll.u32 [#allocation6], 4
      %s36 = int_to_ptr.vmem [resolvable:$true] %s35
      %38 = dma.hbm_to_vmem [thread:$0]  %s34, 128, %s36, [#allocation7]
    $region9: #{tpu_custom_call.1} parent=1 // pred_fallthru
      _
    // Predicated region
    $region10: #{tpu_custom_call.1} parent=1 // pred_check
      _
    $region11: #{tpu_custom_call.1} parent=1 // pred_check_branch
      %40 = sbr.rel (0) target = $region13
    $region12: #{tpu_custom_call.1} parent=1 // pred_region
      %42 = vsyncadd [#allocation7], 0
      %s43 = sshll.u32 %s2, 4
      %s44 = int_to_ptr.hbm [resolvable:$true] %s43
      %s45 = sshll.u32 [#allocation8], 4
      %s46 = int_to_ptr.vmem [resolvable:$true] %s45
      %51 = dma.hbm_to_vmem [thread:$0]  %s44, 256, %s46, [#allocation7], 64, 64, 4
    $region13: #{tpu_custom_call.1} parent=1 // pred_fallthru
      _
    // Predicated region
    $region14: #{tpu_custom_call.1} parent=1 // pred_check
      _
    $region15: #{tpu_custom_call.1} parent=1 // pred_check_branch
      %53 = sbr.rel (0) target = $region17
    $region16: #{tpu_custom_call.1} parent=1 // pred_region
      _
    $region17: #{tpu_custom_call.1} parent=1 // pred_fallthru
      _
    // Predicated region
    $region18: #{tpu_custom_call.1} parent=1 // pred_check
      _
    $region19: #{tpu_custom_call.1} parent=1 // pred_check_branch
      %55 = sbr.rel (0) target = $region21
    $region20: #{tpu_custom_call.1} parent=1 // pred_region
      %57 = vsyncadd [#allocation10], 0
      %s58 = sshll.u32 %s4, 4
      %s59 = int_to_ptr.hbm [resolvable:$true] %s58
      %s60 = sshll.u32 [#allocation9], 4
      %s61 = int_to_ptr.vmem [resolvable:$true] %s60
      %66 = dma.hbm_to_vmem [thread:$0]  %s59, 256, %s61, [#allocation10], 64, 64, 4
    $region21: #{tpu_custom_call.1} parent=1 // pred_fallthru
      _
    // Predicated region
    $region22: #{tpu_custom_call.1} parent=1 // pred_check
      _
    $region23: #{tpu_custom_call.1} parent=1 // pred_check_branch
      %68 = sbr.rel (0) target = $region25
    $region24: #{tpu_custom_call.1} parent=1 // pred_region
      _
    $region25: #{tpu_custom_call.1} parent=1 // pred_fallthru
      _
    // Predicated region
    $region26: #{tpu_custom_call.1} parent=1 // pred_check
      _
    $region27: #{tpu_custom_call.1} parent=1 // pred_check_branch
      %70 = sbr.rel (0) target = $region29
    $region28: #{tpu_custom_call.1} parent=1 // pred_region
      %72 = dma.done [#allocation4], 256
    $region29: #{tpu_custom_call.1} parent=1 // pred_fallthru
      _
    // Predicated region
    $region30: #{tpu_custom_call.1} parent=1 // pred_check
      _
    $region31: #{tpu_custom_call.1} parent=1 // pred_check_branch
      %74 = sbr.rel (0) target = $region33
    $region32: #{tpu_custom_call.1} parent=1 // pred_region
      %76 = dma.done [#allocation7], 128
    $region33: #{tpu_custom_call.1} parent=1 // pred_fallthru
      _
    // Predicated region
    $region34: #{tpu_custom_call.1} parent=1 // pred_check
      _
    $region35: #{tpu_custom_call.1} parent=1 // pred_check_branch
      %78 = sbr.rel (0) target = $region37
    $region36: #{tpu_custom_call.1} parent=1 // pred_region
      %80 = dma.done [#allocation7], 256
    $region37: #{tpu_custom_call.1} parent=1 // pred_fallthru
      _
    // Predicated region
    $region38: #{tpu_custom_call.1} parent=1 // pred_check
      _
    $region39: #{tpu_custom_call.1} parent=1 // pred_check_branch
      %82 = sbr.rel (0) target = $region41
    $region40: #{tpu_custom_call.1} parent=1 // pred_region
      %84 = dma.done [#allocation10], 256
    $region41: #{tpu_custom_call.1} parent=1 // pred_fallthru
      _
    %v86 = vld [vmem:[#allocation3] sm:$0xff]
    %v87 = vld [vmem:[#allocation3 + $0x8] sm:$0xff]
    %v88 = vpack.c.bf16 %v87, %v86
    %v89 = vld [vmem:[#allocation8] sm:$0xf]
    %v90 = vld [vmem:[#allocation8 + $0x4] sm:$0xf]
    %v91 = vld [vmem:[#allocation8 + $0x8] sm:$0xf]
    %v92 = vld [vmem:[#allocation8 + $0xc] sm:$0xf]
    %v93 = vld [vmem:[%s3] sm:$0x1]
    %v95 = vperm.slane %v93, 0
    %v101 = vunpack.c.l.b16 %v89
    %v102 = vunpack.c.l.b16 %v90
    %v103 = vunpack.c.l.b16 %v91
    %v104 = vunpack.c.l.b16 %v92
    %v105 = vpack.c.b16 %v102, %v101
    %v106 = vpack.c.b16 %v104, %v103
    %vm109 = vcmask 261120
    %v111 = vsel %vm109, %v88, 0
    %113 = vmatpush.bf16.msra.mxu0 0
    %114 = vmatpush.bf16.msra.mxu0 0
    %115 = vmatpush.bf16.msra.mxu0 0
    %116 = vmatpush.bf16.msra.mxu0 0
    %117 = vmatpush.bf16.msra.mxu0 0
    %118 = vmatpush.bf16.msra.mxu0 0
    %119 = vmatpush.bf16.msra.mxu0 %v106
    %120 = vmatpush.bf16.msra.mxu0 %v105
    %121 = vmatmul.bf16.gmra.mxu0 %v111
    %v122 = vpop.f32.mrf.mxu0
    %v123 = vadd.f32 %v95, %v122
    %v124 = vpop.f32.mrf.mxu0
    %v125 = vadd.f32 %v95, %v124
    %126 = vdwg.mxu0
    %v127 = vld [vmem:[#allocation6] sm:$0xff]
    %v128 = vpack.c.bf16 %v123, %v123
    %130 = vrot.lane.b32.xlu0 %v128, 96
    %v131 = vpop.permute.xlu0 %130
    %vm132 = vcmask 64512
    %v134 = vsel %vm132, %v128, 0
    %v137 = vsel %vm132, %v131, 0
    %139 = vmatpush.bf16.xpose.msra.mxu0 0
    %140 = vmatpush.bf16.xpose.msra.mxu0 0
    %141 = vmatpush.bf16.xpose.msra.mxu0 0
    %142 = vmatpush.bf16.xpose.msra.mxu0 0
    %143 = vmatpush.bf16.xpose.msra.mxu0 0
    %144 = vmatpush.bf16.xpose.msra.mxu0 0
    %145 = vmatpush.bf16.xpose.msra.mxu0 0
    %146 = vmatpush.bf16.xpose.msra.mxu0 %v137
    %147 = vmatmul.bf16.gmra.mxu0 %v134
    %v148 = vpop.f32.mrf.mxu0
    %v149 = vadd.f32 %v127, %v148
    %v150 = vpop.f32.mrf.mxu0
    %151 = vdwg.mxu0
    %v152 = vsel %vm132, %v149, -inf
    %153 = vmax.xlane.f32.xlu0 %v152
    %v154 = vpop.xlane.xlu0 %153
    %v155 = vsub.f32 %v149, %v154
    %v156 = vmul.f32 %v155, 1.442695
    %v157 = vpow.pop %v156
    %v158 = vsel %vm132, %v157, 0.0
    %159 = vadd.xlane.f32.xlu0 %v158
    %v160 = vpop.xlane.xlu0 %159
    %v161 = vrcp.pop %v160
    %v162 = vmul.f32 %v157, %v161
    %v163 = vpack.c.bf16 %v162, %v162
    %164 = vrot.lane.b32.xlu0 %v128, 64
    %v165 = vpop.permute.xlu0 %164
    %v167 = vsel %vm132, %v163, 0
    %vm169 = vcmask 1043456
    %v171 = vsel %vm169, %v165, 0
    %173 = vmatpush.bf16.msra.mxu0 0
    %174 = vmatpush.bf16.msra.mxu0 0
    %175 = vmatpush.bf16.msra.mxu0 0
    %176 = vmatpush.bf16.msra.mxu0 0
    %177 = vmatpush.bf16.msra.mxu0 0
    %178 = vmatpush.bf16.msra.mxu0 0
    %179 = vmatpush.bf16.msra.mxu0 0
    %180 = vmatpush.bf16.msra.mxu0 %v171
    %181 = vmatmul.bf16.gmra.mxu0 %v167
    %v182 = vpop.f32.mrf.mxu0
    %v183 = vadd.f32 0.0, %v182
    %v184 = vpop.f32.mrf.mxu0
    %185 = vdwg.mxu0
    %186 = vst.msk [vmem:[#allocation2] sm:$0xff] %vm132, %v183
    %187 = vrot.lane.b32.xlu0 %v128, 120
    %v188 = vpop.permute.xlu0 %187
    %189 = vrot.lane.b32.xlu0 %v128, 88
    %v190 = vpop.permute.xlu0 %189
    %v192 = vsel %vm132, %v188, 0
    %v195 = vsel %vm132, %v190, 0
    %197 = vmatpush.bf16.xpose.msra.mxu0 0
    %198 = vmatpush.bf16.xpose.msra.mxu0 0
    %199 = vmatpush.bf16.xpose.msra.mxu0 0
    %200 = vmatpush.bf16.xpose.msra.mxu0 0
    %201 = vmatpush.bf16.xpose.msra.mxu0 0
    %202 = vmatpush.bf16.xpose.msra.mxu0 0
    %203 = vmatpush.bf16.xpose.msra.mxu0 0
    %204 = vmatpush.bf16.xpose.msra.mxu0 %v195
    %205 = vmatmul.bf16.gmra.mxu0 %v192
    %v206 = vpop.f32.mrf.mxu0
    %v207 = vadd.f32 %v127, %v206
    %v208 = vpop.f32.mrf.mxu0
    %209 = vdwg.mxu0
    %v210 = vsel %vm132, %v207, -inf
    %211 = vmax.xlane.f32.xlu0 %v210
    %v212 = vpop.xlane.xlu0 %211
    %v213 = vsub.f32 %v207, %v212
    %v214 = vmul.f32 %v213, 1.442695
    %v215 = vpow.pop %v214
    %v216 = vsel %vm132, %v215, 0.0
    %217 = vadd.xlane.f32.xlu0 %v216
    %v218 = vpop.xlane.xlu0 %217
    %v219 = vrcp.pop %v218
    %v220 = vmul.f32 %v215, %v219
    %v221 = vpack.c.bf16 %v220, %v220
    %222 = vrot.lane.b32.xlu0 %v128, 56
    %v223 = vpop.permute.xlu0 %222
    %v225 = vsel %vm132, %v221, 0
    %v228 = vsel %vm169, %v223, 0
    %230 = vmatpush.bf16.msra.mxu0 0
    %231 = vmatpush.bf16.msra.mxu0 0
    %232 = vmatpush.bf16.msra.mxu0 0
    %233 = vmatpush.bf16.msra.mxu0 0
    %234 = vmatpush.bf16.msra.mxu0 0
    %235 = vmatpush.bf16.msra.mxu0 0
    %236 = vmatpush.bf16.msra.mxu0 0
    %237 = vmatpush.bf16.msra.mxu0 %v228
    %238 = vmatmul.bf16.gmra.mxu0 %v225
    %v239 = vpop.f32.mrf.mxu0
    %v240 = vadd.f32 0.0, %v239
    %v241 = vpop.f32.mrf.mxu0
    %242 = vdwg.mxu0
    %244 = vrot.lane.b32.xlu0 %v240, 8
    %v245 = vpop.permute.xlu0 %244
    %vm247 = vcmask 130112
    %248 = vst.msk [vmem:[#allocation2] sm:$0xff] %vm247, %v245
    %249 = vrot.lane.b32.xlu0 %v128, 112
    %v250 = vpop.permute.xlu0 %249
    %251 = vrot.lane.b32.xlu0 %v128, 80
    %v252 = vpop.permute.xlu0 %251
    %v254 = vsel %vm132, %v250, 0
    %v257 = vsel %vm132, %v252, 0
    %259 = vmatpush.bf16.xpose.msra.mxu0 0
    %260 = vmatpush.bf16.xpose.msra.mxu0 0
    %261 = vmatpush.bf16.xpose.msra.mxu0 0
    %262 = vmatpush.bf16.xpose.msra.mxu0 0
    %263 = vmatpush.bf16.xpose.msra.mxu0 0
    %264 = vmatpush.bf16.xpose.msra.mxu0 0
    %265 = vmatpush.bf16.xpose.msra.mxu0 0
    %266 = vmatpush.bf16.xpose.msra.mxu0 %v257
    %267 = vmatmul.bf16.gmra.mxu0 %v254
    %v268 = vpop.f32.mrf.mxu0
    %v269 = vadd.f32 %v127, %v268
    %v270 = vpop.f32.mrf.mxu0
    %271 = vdwg.mxu0
    %v272 = vsel %vm132, %v269, -inf
    %273 = vmax.xlane.f32.xlu0 %v272
    %v274 = vpop.xlane.xlu0 %273
    %v275 = vsub.f32 %v269, %v274
    %v276 = vmul.f32 %v275, 1.442695
    %v277 = vpow.pop %v276
    %v278 = vsel %vm132, %v277, 0.0
    %279 = vadd.xlane.f32.xlu0 %v278
    %v280 = vpop.xlane.xlu0 %279
    %v281 = vrcp.pop %v280
    %v282 = vmul.f32 %v277, %v281
    %v283 = vpack.c.bf16 %v282, %v282
    %284 = vrot.lane.b32.xlu0 %v128, 48
    %v285 = vpop.permute.xlu0 %284
    %v287 = vsel %vm132, %v283, 0
    %v290 = vsel %vm169, %v285, 0
    %292 = vmatpush.bf16.msra.mxu0 0
    %293 = vmatpush.bf16.msra.mxu0 0
    %294 = vmatpush.bf16.msra.mxu0 0
    %295 = vmatpush.bf16.msra.mxu0 0
    %296 = vmatpush.bf16.msra.mxu0 0
    %297 = vmatpush.bf16.msra.mxu0 0
    %298 = vmatpush.bf16.msra.mxu0 0
    %299 = vmatpush.bf16.msra.mxu0 %v290
    %300 = vmatmul.bf16.gmra.mxu0 %v287
    %v301 = vpop.f32.mrf.mxu0
    %v302 = vadd.f32 0.0, %v301
    %v303 = vpop.f32.mrf.mxu0
    %304 = vdwg.mxu0
    %306 = vrot.lane.b32.xlu0 %v302, 16
    %v307 = vpop.permute.xlu0 %306
    %vm309 = vcmask 195712
    %310 = vst.msk [vmem:[#allocation2] sm:$0xff] %vm309, %v307
    %311 = vrot.lane.b32.xlu0 %v128, 104
    %v312 = vpop.permute.xlu0 %311
    %313 = vrot.lane.b32.xlu0 %v128, 72
    %v314 = vpop.permute.xlu0 %313
    %v316 = vsel %vm132, %v312, 0
    %v319 = vsel %vm132, %v314, 0
    %321 = vmatpush.bf16.xpose.msra.mxu0 0
    %322 = vmatpush.bf16.xpose.msra.mxu0 0
    %323 = vmatpush.bf16.xpose.msra.mxu0 0
    %324 = vmatpush.bf16.xpose.msra.mxu0 0
    %325 = vmatpush.bf16.xpose.msra.mxu0 0
    %326 = vmatpush.bf16.xpose.msra.mxu0 0
    %327 = vmatpush.bf16.xpose.msra.mxu0 0
    %328 = vmatpush.bf16.xpose.msra.mxu0 %v319
    %329 = vmatmul.bf16.gmra.mxu0 %v316
    %v330 = vpop.f32.mrf.mxu0
    %v331 = vadd.f32 %v127, %v330
    %v332 = vpop.f32.mrf.mxu0
    %333 = vdwg.mxu0
    %v334 = vsel %vm132, %v331, -inf
    %335 = vmax.xlane.f32.xlu0 %v334
    %v336 = vpop.xlane.xlu0 %335
    %v337 = vsub.f32 %v331, %v336
    %v338 = vmul.f32 %v337, 1.442695
    %v339 = vpow.pop %v338
    %v340 = vsel %vm132, %v339, 0.0
    %341 = vadd.xlane.f32.xlu0 %v340
    %v342 = vpop.xlane.xlu0 %341
    %v343 = vrcp.pop %v342
    %v344 = vmul.f32 %v339, %v343
    %v345 = vpack.c.bf16 %v344, %v344
    %346 = vrot.lane.b32.xlu0 %v128, 40
    %v347 = vpop.permute.xlu0 %346
    %v349 = vsel %vm132, %v345, 0
    %v352 = vsel %vm169, %v347, 0
    %354 = vmatpush.bf16.msra.mxu0 0
    %355 = vmatpush.bf16.msra.mxu0 0
    %356 = vmatpush.bf16.msra.mxu0 0
    %357 = vmatpush.bf16.msra.mxu0 0
    %358 = vmatpush.bf16.msra.mxu0 0
    %359 = vmatpush.bf16.msra.mxu0 0
    %360 = vmatpush.bf16.msra.mxu0 0
    %361 = vmatpush.bf16.msra.mxu0 %v352
    %362 = vmatmul.bf16.gmra.mxu0 %v349
    %v363 = vpop.f32.mrf.mxu0
    %v364 = vadd.f32 0.0, %v363
    %v365 = vpop.f32.mrf.mxu0
    %366 = vdwg.mxu0
    %368 = vrot.lane.b32.xlu0 %v364, 24
    %v369 = vpop.permute.xlu0 %368
    %vm371 = vcmask 261312
    %372 = vst.msk [vmem:[#allocation2] sm:$0xff] %vm371, %v369
    %v373 = vld [vmem:[#allocation6] sm:$0xff]
    %v374 = vpack.c.bf16 %v125, %v125
    %376 = vrot.lane.b32.xlu0 %v374, 96
    %v377 = vpop.permute.xlu0 %376
    %v379 = vsel %vm132, %v374, 0
    %v382 = vsel %vm132, %v377, 0
    %384 = vmatpush.bf16.xpose.msra.mxu0 0
    %385 = vmatpush.bf16.xpose.msra.mxu0 0
    %386 = vmatpush.bf16.xpose.msra.mxu0 0
    %387 = vmatpush.bf16.xpose.msra.mxu0 0
    %388 = vmatpush.bf16.xpose.msra.mxu0 0
    %389 = vmatpush.bf16.xpose.msra.mxu0 0
    %390 = vmatpush.bf16.xpose.msra.mxu0 0
    %391 = vmatpush.bf16.xpose.msra.mxu0 %v382
    %392 = vmatmul.bf16.gmra.mxu0 %v379
    %v393 = vpop.f32.mrf.mxu0
    %v394 = vadd.f32 %v373, %v393
    %v395 = vpop.f32.mrf.mxu0
    %396 = vdwg.mxu0
    %v397 = vsel %vm132, %v394, -inf
    %398 = vmax.xlane.f32.xlu0 %v397
    %v399 = vpop.xlane.xlu0 %398
    %v400 = vsub.f32 %v394, %v399
    %v401 = vmul.f32 %v400, 1.442695
    %v402 = vpow.pop %v401
    %v403 = vsel %vm132, %v402, 0.0
    %404 = vadd.xlane.f32.xlu0 %v403
    %v405 = vpop.xlane.xlu0 %404
    %v406 = vrcp.pop %v405
    %v407 = vmul.f32 %v402, %v406
    %v408 = vpack.c.bf16 %v407, %v407
    %409 = vrot.lane.b32.xlu0 %v374, 64
    %v410 = vpop.permute.xlu0 %409
    %v412 = vsel %vm132, %v408, 0
    %v415 = vsel %vm169, %v410, 0
    %417 = vmatpush.bf16.msra.mxu0 0
    %418 = vmatpush.bf16.msra.mxu0 0
    %419 = vmatpush.bf16.msra.mxu0 0
    %420 = vmatpush.bf16.msra.mxu0 0
    %421 = vmatpush.bf16.msra.mxu0 0
    %422 = vmatpush.bf16.msra.mxu0 0
    %423 = vmatpush.bf16.msra.mxu0 0
    %424 = vmatpush.bf16.msra.mxu0 %v415
    %425 = vmatmul.bf16.gmra.mxu0 %v412
    %v426 = vpop.f32.mrf.mxu0
    %v427 = vadd.f32 0.0, %v426
    %v428 = vpop.f32.mrf.mxu0
    %429 = vdwg.mxu0
    %430 = vst.msk [vmem:[#allocation2 + $0x8] sm:$0xff] %vm132, %v427
    %431 = vrot.lane.b32.xlu0 %v374, 120
    %v432 = vpop.permute.xlu0 %431
    %433 = vrot.lane.b32.xlu0 %v374, 88
    %v434 = vpop.permute.xlu0 %433
    %v436 = vsel %vm132, %v432, 0
    %v439 = vsel %vm132, %v434, 0
    %441 = vmatpush.bf16.xpose.msra.mxu0 0
    %442 = vmatpush.bf16.xpose.msra.mxu0 0
    %443 = vmatpush.bf16.xpose.msra.mxu0 0
    %444 = vmatpush.bf16.xpose.msra.mxu0 0
    %445 = vmatpush.bf16.xpose.msra.mxu0 0
    %446 = vmatpush.bf16.xpose.msra.mxu0 0
    %447 = vmatpush.bf16.xpose.msra.mxu0 0
    %448 = vmatpush.bf16.xpose.msra.mxu0 %v439
    %449 = vmatmul.bf16.gmra.mxu0 %v436
    %v450 = vpop.f32.mrf.mxu0
    %v451 = vadd.f32 %v373, %v450
    %v452 = vpop.f32.mrf.mxu0
    %453 = vdwg.mxu0
    %v454 = vsel %vm132, %v451, -inf
    %455 = vmax.xlane.f32.xlu0 %v454
    %v456 = vpop.xlane.xlu0 %455
    %v457 = vsub.f32 %v451, %v456
    %v458 = vmul.f32 %v457, 1.442695
    %v459 = vpow.pop %v458
    %v460 = vsel %vm132, %v459, 0.0
    %461 = vadd.xlane.f32.xlu0 %v460
    %v462 = vpop.xlane.xlu0 %461
    %v463 = vrcp.pop %v462
    %v464 = vmul.f32 %v459, %v463
    %v465 = vpack.c.bf16 %v464, %v464
    %466 = vrot.lane.b32.xlu0 %v374, 56
    %v467 = vpop.permute.xlu0 %466
    %v469 = vsel %vm132, %v465, 0
    %v472 = vsel %vm169, %v467, 0
    %474 = vmatpush.bf16.msra.mxu0 0
    %475 = vmatpush.bf16.msra.mxu0 0
    %476 = vmatpush.bf16.msra.mxu0 0
    %477 = vmatpush.bf16.msra.mxu0 0
    %478 = vmatpush.bf16.msra.mxu0 0
    %479 = vmatpush.bf16.msra.mxu0 0
    %480 = vmatpush.bf16.msra.mxu0 0
    %481 = vmatpush.bf16.msra.mxu0 %v472
    %482 = vmatmul.bf16.gmra.mxu0 %v469
    %v483 = vpop.f32.mrf.mxu0
    %v484 = vadd.f32 0.0, %v483
    %v485 = vpop.f32.mrf.mxu0
    %486 = vdwg.mxu0
    %488 = vrot.lane.b32.xlu0 %v484, 8
    %v489 = vpop.permute.xlu0 %488
    %491 = vst.msk [vmem:[#allocation2 + $0x8] sm:$0xff] %vm247, %v489
    %492 = vrot.lane.b32.xlu0 %v374, 112
    %v493 = vpop.permute.xlu0 %492
    %494 = vrot.lane.b32.xlu0 %v374, 80
    %v495 = vpop.permute.xlu0 %494
    %v497 = vsel %vm132, %v493, 0
    %v500 = vsel %vm132, %v495, 0
    %502 = vmatpush.bf16.xpose.msra.mxu0 0
    %503 = vmatpush.bf16.xpose.msra.mxu0 0
    %504 = vmatpush.bf16.xpose.msra.mxu0 0
    %505 = vmatpush.bf16.xpose.msra.mxu0 0
    %506 = vmatpush.bf16.xpose.msra.mxu0 0
    %507 = vmatpush.bf16.xpose.msra.mxu0 0
    %508 = vmatpush.bf16.xpose.msra.mxu0 0
    %509 = vmatpush.bf16.xpose.msra.mxu0 %v500
    %510 = vmatmul.bf16.gmra.mxu0 %v497
    %v511 = vpop.f32.mrf.mxu0
    %v512 = vadd.f32 %v373, %v511
    %v513 = vpop.f32.mrf.mxu0
    %514 = vdwg.mxu0
    %v515 = vsel %vm132, %v512, -inf
    %516 = vmax.xlane.f32.xlu0 %v515
    %v517 = vpop.xlane.xlu0 %516
    %v518 = vsub.f32 %v512, %v517
    %v519 = vmul.f32 %v518, 1.442695
    %v520 = vpow.pop %v519
    %v521 = vsel %vm132, %v520, 0.0
    %522 = vadd.xlane.f32.xlu0 %v521
    %v523 = vpop.xlane.xlu0 %522
    %v524 = vrcp.pop %v523
    %v525 = vmul.f32 %v520, %v524
    %v526 = vpack.c.bf16 %v525, %v525
    %527 = vrot.lane.b32.xlu0 %v374, 48
    %v528 = vpop.permute.xlu0 %527
    %v530 = vsel %vm132, %v526, 0
    %v533 = vsel %vm169, %v528, 0
    %535 = vmatpush.bf16.msra.mxu0 0
    %536 = vmatpush.bf16.msra.mxu0 0
    %537 = vmatpush.bf16.msra.mxu0 0
    %538 = vmatpush.bf16.msra.mxu0 0
    %539 = vmatpush.bf16.msra.mxu0 0
    %540 = vmatpush.bf16.msra.mxu0 0
    %541 = vmatpush.bf16.msra.mxu0 0
    %542 = vmatpush.bf16.msra.mxu0 %v533
    %543 = vmatmul.bf16.gmra.mxu0 %v530
    %v544 = vpop.f32.mrf.mxu0
    %v545 = vadd.f32 0.0, %v544
    %v546 = vpop.f32.mrf.mxu0
    %547 = vdwg.mxu0
    %549 = vrot.lane.b32.xlu0 %v545, 16
    %v550 = vpop.permute.xlu0 %549
    %552 = vst.msk [vmem:[#allocation2 + $0x8] sm:$0xff] %vm309, %v550
    %553 = vrot.lane.b32.xlu0 %v374, 104
    %v554 = vpop.permute.xlu0 %553
    %555 = vrot.lane.b32.xlu0 %v374, 72
    %v556 = vpop.permute.xlu0 %555
    %v558 = vsel %vm132, %v554, 0
    %v561 = vsel %vm132, %v556, 0
    %563 = vmatpush.bf16.xpose.msra.mxu0 0
    %564 = vmatpush.bf16.xpose.msra.mxu0 0
    %565 = vmatpush.bf16.xpose.msra.mxu0 0
    %566 = vmatpush.bf16.xpose.msra.mxu0 0
    %567 = vmatpush.bf16.xpose.msra.mxu0 0
    %568 = vmatpush.bf16.xpose.msra.mxu0 0
    %569 = vmatpush.bf16.xpose.msra.mxu0 0
    %570 = vmatpush.bf16.xpose.msra.mxu0 %v561
    %571 = vmatmul.bf16.gmra.mxu0 %v558
    %v572 = vpop.f32.mrf.mxu0
    %v573 = vadd.f32 %v373, %v572
    %v574 = vpop.f32.mrf.mxu0
    %575 = vdwg.mxu0
    %v576 = vsel %vm132, %v573, -inf
    %577 = vmax.xlane.f32.xlu0 %v576
    %v578 = vpop.xlane.xlu0 %577
    %v579 = vsub.f32 %v573, %v578
    %v580 = vmul.f32 %v579, 1.442695
    %v581 = vpow.pop %v580
    %v582 = vsel %vm132, %v581, 0.0
    %583 = vadd.xlane.f32.xlu0 %v582
    %v584 = vpop.xlane.xlu0 %583
    %v585 = vrcp.pop %v584
    %v586 = vmul.f32 %v581, %v585
    %v587 = vpack.c.bf16 %v586, %v586
    %588 = vrot.lane.b32.xlu0 %v374, 40
    %v589 = vpop.permute.xlu0 %588
    %v591 = vsel %vm132, %v587, 0
    %v594 = vsel %vm169, %v589, 0
    %596 = vmatpush.bf16.msra.mxu0 0
    %597 = vmatpush.bf16.msra.mxu0 0
    %598 = vmatpush.bf16.msra.mxu0 0
    %599 = vmatpush.bf16.msra.mxu0 0
    %600 = vmatpush.bf16.msra.mxu0 0
    %601 = vmatpush.bf16.msra.mxu0 0
    %602 = vmatpush.bf16.msra.mxu0 0
    %603 = vmatpush.bf16.msra.mxu0 %v594
    %604 = vmatmul.bf16.gmra.mxu0 %v591
    %v605 = vpop.f32.mrf.mxu0
    %v606 = vadd.f32 0.0, %v605
    %v607 = vpop.f32.mrf.mxu0
    %608 = vdwg.mxu0
    %610 = vrot.lane.b32.xlu0 %v606, 24
    %v611 = vpop.permute.xlu0 %610
    %613 = vst.msk [vmem:[#allocation2 + $0x8] sm:$0xff] %vm371, %v611
    %v614 = vld [vmem:[#allocation2] sm:$0xff]
    %v615 = vld [vmem:[#allocation2 + $0x8] sm:$0xff]
    %v616 = vpack.c.bf16 %v615, %v614
    %v617 = vld [vmem:[#allocation9] sm:$0xf]
    %v618 = vld [vmem:[#allocation9 + $0x4] sm:$0xf]
    %v619 = vld [vmem:[#allocation9 + $0x8] sm:$0xf]
    %v620 = vld [vmem:[#allocation9 + $0xc] sm:$0xf]
    %v621 = vld [vmem:[%s5] sm:$0x1]
    %v623 = vperm.slane %v621, 0
    %v629 = vunpack.c.l.b16 %v617
    %v630 = vunpack.c.l.b16 %v618
    %v631 = vunpack.c.l.b16 %v619
    %v632 = vunpack.c.l.b16 %v620
    %v633 = vpack.c.b16 %v630, %v629
    %v634 = vpack.c.b16 %v632, %v631
    %v638 = vsel %vm109, %v616, 0
    %640 = vmatpush.bf16.msra.mxu0 0
    %641 = vmatpush.bf16.msra.mxu0 0
    %642 = vmatpush.bf16.msra.mxu0 0
    %643 = vmatpush.bf16.msra.mxu0 0
    %644 = vmatpush.bf16.msra.mxu0 0
    %645 = vmatpush.bf16.msra.mxu0 0
    %646 = vmatpush.bf16.msra.mxu0 %v634
    %647 = vmatpush.bf16.msra.mxu0 %v633
    %648 = vmatmul.bf16.gmra.mxu0 %v638
    %v649 = vpop.f32.mrf.mxu0
    %v650 = vadd.f32 %v623, %v649
    %v651 = vpop.f32.mrf.mxu0
    %v652 = vadd.f32 %v623, %v651
    %653 = vdwg.mxu0
    %654 = vst.msk [vmem:[#allocation11] sm:$0xff] %vm109, %v650
    %655 = vst.msk [vmem:[#allocation11 + $0x8] sm:$0xff] %vm109, %v652
    // Predicated region
    $region42: #{tpu_custom_call.1} parent=1 // pred_check
      _
    $region43: #{tpu_custom_call.1} parent=1 // pred_check_branch
      %657 = sbr.rel (0) target = $region45
    $region44: #{tpu_custom_call.1} parent=1 // pred_region
      %659 = vsyncadd [#allocation5], 0
      %s660 = sshll.u32 [#allocation11], 4
      %s661 = int_to_ptr.vmem [resolvable:$true] %s660
      %s662 = sshll.u32 %s6, 4
      %s663 = int_to_ptr.hbm [resolvable:$true] %s662
      %668 = dma.vmem_to_hbm [thread:$0]  %s661, 256, %s663, [#allocation5], 128, 128, 8
    $region45: #{tpu_custom_call.1} parent=1 // pred_fallthru
      _
    // Predicated region
    $region46: #{tpu_custom_call.1} parent=1 // pred_check
      _
    $region47: #{tpu_custom_call.1} parent=1 // pred_check_branch
      %670 = sbr.rel (0) target = $region49
    $region48: #{tpu_custom_call.1} parent=1 // pred_region
      %672 = dma.done [#allocation5], 256
    $region49: #{tpu_custom_call.1} parent=1 // pred_fallthru
      _
    %673 = vsyncpa [#allocation4], 1
    %674 = vsyncpa [#allocation7], 1
    %675 = vsyncpa [#allocation10], 1
    %676 = vsyncpa [#allocation5], 1

</llo_original>
